<compile_context>
chip_gen: v5e
topology: v5e:2x2
jax: 0.10.0
libtpu: 0.0.40
codegen_flags: <defaults>
</compile_context>

<pallas_src>
import functools

import jax
import jax.numpy as jnp
from jax.experimental import pallas as pl
from jax.experimental.pallas import tpu as pltpu


_VMEM_LIMIT_BYTES = 28 * 1024 * 1024      # safe on v5e/v6e (128 MiB) and v7x (64 MiB)
_FUSED_BLOCK_BUDGET = 16 * 1024 * 1024    # 2x double-buffered (in + out) slabs
_TILE_BLOCK_BUDGET = 12 * 1024 * 1024     # streaming-pass block budget (two-pass)
_MAX_SPATIAL_TILE = 8192                  # lanes; diminishing BW returns beyond this


# ---------------------------------------------------------------------------
# Fused one-pass kernel: pool + SE MLP + gate, whole (C, HW) slab resident.
# ---------------------------------------------------------------------------
def _fused_kernel(x_ref, w1_ref, b1_ref, w2_ref, b2_ref, o_ref, *, hw):
    # x_ref: (1, C, HW)  w1_ref: (Cr, C)  b1_ref: (Cr, 1)
    # w2_ref: (C, Cr)    b2_ref: (C, 1)   o_ref: (1, C, HW)
    x = x_ref[0]                                                   # (C, HW), input dtype

    # Squeeze: spatial mean, accumulated in f32 (no full-slab upcast).
    pooled = jnp.sum(x, axis=1, keepdims=True,
                     dtype=jnp.float32) * (1.0 / hw)               # (C, 1) f32

    # Excite: tiny per-image MLP in f32.  N=1 GEMVs -> a few hundred MXU cycles
    # per grid step; negligible next to the streaming DMA for this path.
    h = jnp.dot(w1_ref[...], pooled,
                preferred_element_type=jnp.float32) + b1_ref[...]  # (Cr, 1)
    h = jnp.maximum(h, 0.0)
    y = jnp.dot(w2_ref[...], h,
                preferred_element_type=jnp.float32) + b2_ref[...]  # (C, 1)
    y = jax.nn.sigmoid(y)

    # Gate in the input dtype: only the (C,1) gate is cast, not the slab.
    o_ref[0] = x * y.astype(x.dtype)


def _fused_call(x_flat, w1, b1, w2, b2, *, B, C, Cr, HW):
    b1_col = b1.reshape(Cr, 1)
    b2_col = b2.reshape(C, 1)
    return pl.pallas_call(
        functools.partial(_fused_kernel, hw=HW),
        out_shape=jax.ShapeDtypeStruct((B, C, HW), x_flat.dtype),
        grid_spec=pltpu.PrefetchScalarGridSpec(
            num_scalar_prefetch=0,
            grid=(B,),
            in_specs=[
                pl.BlockSpec((1, C, HW), lambda b: (b, 0, 0)),
                pl.BlockSpec((Cr, C), lambda b: (0, 0)),
                pl.BlockSpec((Cr, 1), lambda b: (0, 0)),
                pl.BlockSpec((C, Cr), lambda b: (0, 0)),
                pl.BlockSpec((C, 1), lambda b: (0, 0)),
            ],
            out_specs=pl.BlockSpec((1, C, HW), lambda b: (b, 0, 0)),
        ),
        compiler_params=pltpu.CompilerParams(
            dimension_semantics=("parallel",),
            vmem_limit_bytes=_VMEM_LIMIT_BYTES),
    )(x_flat, w1, b1_col, w2, b2_col)


# ---------------------------------------------------------------------------
# Two-pass path: HW-tiled pooling reduction, JAX MLP, HW-tiled gating pass.
# ---------------------------------------------------------------------------
def _pool_sum_kernel(x_ref, sum_ref, *, hw, tile, need_mask):
    # x_ref: (1, C, tile)   sum_ref: (1, C, 1) f32 accumulator (resident over t)
    t = pl.program_id(1)

    @pl.when(t == 0)
    def _init():
        sum_ref[...] = jnp.zeros_like(sum_ref)

    x = x_ref[0]                                                   # (C, tile)
    if need_mask:
        # Mask lanes past the true spatial extent on the partial tail tile.
        lane = jax.lax.broadcasted_iota(jnp.int32, x.shape, 1) + t * tile
        x = jnp.where(lane < hw, x, jnp.zeros_like(x))
    part = jnp.sum(x, axis=1, keepdims=True, dtype=jnp.float32)    # (C, 1) f32
    sum_ref[...] += part[None]


def _gate_kernel(x_ref, y_ref, o_ref):
    # x_ref: (1, C, tile)   y_ref: (1, C, 1)   o_ref: (1, C, tile)
    # Lane-dense streaming store; OOB portion of a partial tail block is dropped.
    o_ref[...] = (x_ref[...] * y_ref[...]).astype(o_ref.dtype)


def _choose_spatial_tile(C, HW, itemsize):
    max_t = _TILE_BLOCK_BUDGET // (4 * C * itemsize)   # 4 = dbl-buffered in + out
    max_t = min(max_t, _MAX_SPATIAL_TILE)
    if HW <= max_t:
        return HW                       # single full-extent block (no 128 constraint)
    return max(128, (max_t // 128) * 128)


def _two_pass_call(x_flat, w1, b1, w2, b2, *, B, C, HW, itemsize, spatial_tile):
    if spatial_tile is None:
        tile = _choose_spatial_tile(C, HW, itemsize)
    else:
        tile = HW if spatial_tile >= HW else max(128, (spatial_tile // 128) * 128)
    n_t = pl.cdiv(HW, tile)
    need_mask = (HW % tile) != 0

    # Pass 1: per-(image, channel) spatial sums in f32.
    sums = pl.pallas_call(
        functools.partial(_pool_sum_kernel, hw=HW, tile=tile, need_mask=need_mask),
        out_shape=jax.ShapeDtypeStruct((B, C, 1), jnp.float32),
        grid_spec=pltpu.PrefetchScalarGridSpec(
            num_scalar_prefetch=0,
            grid=(B, n_t),
            in_specs=[pl.BlockSpec((1, C, tile), lambda b, t: (b, 0, t))],
            out_specs=pl.BlockSpec((1, C, 1), lambda b, t: (b, 0, 0)),
        ),
        compiler_params=pltpu.CompilerParams(
            dimension_semantics=("parallel", "arbitrary"),
            vmem_limit_bytes=_VMEM_LIMIT_BYTES),
    )(x_flat)

    # Tiny SE MLP batched over all B in plain JAX (f32); keeps N=1 GEMVs off the
    # MXU inside the streaming kernels and is negligible vs the DMA cost.
    pooled = sums[:, :, 0] * (1.0 / HW)                                 # (B, C) f32
    h = jnp.maximum(pooled @ w1.astype(jnp.float32).T
                    + b1.astype(jnp.float32)[None, :], 0.0)             # (B, Cr)
    y = jax.nn.sigmoid(h @ w2.astype(jnp.float32).T
                       + b2.astype(jnp.float32)[None, :])               # (B, C)
    y = y.astype(x_flat.dtype).reshape(B, C, 1)

    # Pass 2: streaming gate, both grid axes parallel (feeds both TCs on v7x).
    return pl.pallas_call(
        _gate_kernel,
        out_shape=jax.ShapeDtypeStruct((B, C, HW), x_flat.dtype),
        grid_spec=pltpu.PrefetchScalarGridSpec(
            num_scalar_prefetch=0,
            grid=(B, n_t),
            in_specs=[
                pl.BlockSpec((1, C, tile), lambda b, t: (b, 0, t)),
                pl.BlockSpec((1, C, 1), lambda b, t: (b, 0, 0)),
            ],
            out_specs=pl.BlockSpec((1, C, tile), lambda b, t: (b, 0, t)),
        ),
        compiler_params=pltpu.CompilerParams(
            dimension_semantics=("parallel", "parallel"),
            vmem_limit_bytes=_VMEM_LIMIT_BYTES),
    )(x_flat, y)


# ---------------------------------------------------------------------------
# Public wrapper (matches the PyTorch module's forward).
# ---------------------------------------------------------------------------
def channel_attention(x, w1, b1, w2, b2, *, force_two_pass=False, spatial_tile=None):
    """x: (B, C, H, W) NCHW; w1: (Cr, C); b1: (Cr,); w2: (C, Cr); b2: (C,)."""
    B, C, H, W = x.shape
    Cr = w1.shape[0]
    HW = H * W
    itemsize = jnp.dtype(x.dtype).itemsize
    x_flat = x.reshape(B, C, HW)

    fused_ok = (4 * C * HW * itemsize) <= _FUSED_BLOCK_BUDGET
    if fused_ok and not force_two_pass:
        out_flat = _fused_call(x_flat, w1, b1, w2, b2, B=B, C=C, Cr=Cr, HW=HW)
    else:
        out_flat = _two_pass_call(x_flat, w1, b1, w2, b2, B=B, C=C, HW=HW,
                                  itemsize=itemsize, spatial_tile=spatial_tile)
    return out_flat.reshape(B, C, H, W)


def _reference(x, w1, b1, w2, b2):
    pooled = jnp.mean(x, axis=(2, 3))                       # (B, C)
    h = jnp.maximum(pooled @ w1.T + b1, 0.0)                # (B, Cr)
    y = jax.nn.sigmoid(h @ w2.T + b2)                       # (B, C)
    return x * y[:, :, None, None]


if __name__ == "__main__":
    key = jax.random.PRNGKey(0)
    kx, k1, k2, k3, k4, kx2 = jax.random.split(key, 6)

    B, C = 2, 64
    reduction_ratio = 16
    Cr = C // reduction_ratio                               # 4

    w1 = jax.random.normal(k1, (Cr, C), dtype=jnp.float32) * 0.1
    b1 = jax.random.normal(k2, (Cr,), dtype=jnp.float32) * 0.1
    w2 = jax.random.normal(k3, (C, Cr), dtype=jnp.float32) * 0.1
    b2 = jax.random.normal(k4, (C,), dtype=jnp.float32) * 0.1

    # 1) Fused one-pass path (slab resident in VMEM), H = W = 16.
    x = jax.random.normal(kx, (B, C, 16, 16), dtype=jnp.float32)
    out = jax.block_until_ready(channel_attention(x, w1, b1, w2, b2))
    ref = _reference(x, w1, b1, w2, b2)
    assert out.shape == x.shape
    assert jnp.allclose(out, ref, atol=1e-5, rtol=1e-5)

    # 2) Two-pass path with HW tiling and a partial tail tile (HW = 17*17 = 289).
    x2 = jax.random.normal(kx2, (B, C, 17, 17), dtype=jnp.float32)
    out2 = jax.block_until_ready(
        channel_attention(x2, w1, b1, w2, b2, force_two_pass=True, spatial_tile=128))
    ref2 = _reference(x2, w1, b1, w2, b2)
    assert jnp.allclose(out2, ref2, atol=1e-5, rtol=1e-5)

    print("KERNEL_OK")
</pallas_src>

<mosaic_0001>
module attributes {stable_mosaic.version = 11 : i64} {
  func.func @_fused_kernel(%arg0: i32, %arg1: memref<1x64x256xf32, #tpu.memory_space<vmem>>, %arg2: memref<4x64xf32, #tpu.memory_space<vmem>>, %arg3: memref<4x1xf32, #tpu.memory_space<vmem>>, %arg4: memref<64x4xf32, #tpu.memory_space<vmem>>, %arg5: memref<64x1xf32, #tpu.memory_space<vmem>>, %arg6: memref<1x64x256xf32, #tpu.memory_space<vmem>>) attributes {dimension_semantics = [#tpu.dimension_semantics<parallel>], iteration_bounds = array<i64: 2>, scalar_prefetch = 0 : i64, scratch_operands = 0 : i64, tpu.core_type = #tpu.core_type<tc>, window_params = [{transform_indices = @transform_0, window_bounds = array<i64: 1, 64, 256>}, {pipeline_mode = #tpu.pipeline_mode<synchronous>, transform_indices = @transform_1, window_bounds = array<i64: 4, 64>}, {pipeline_mode = #tpu.pipeline_mode<synchronous>, transform_indices = @transform_2, window_bounds = array<i64: 4, 1>}, {pipeline_mode = #tpu.pipeline_mode<synchronous>, transform_indices = @transform_3, window_bounds = array<i64: 64, 4>}, {pipeline_mode = #tpu.pipeline_mode<synchronous>, transform_indices = @transform_4, window_bounds = array<i64: 64, 1>}, {transform_indices = @transform_5, window_bounds = array<i64: 1, 64, 256>}]} {
    %c0 = arith.constant 0 : index
    %c0_0 = arith.constant 0 : index
    %c0_1 = arith.constant 0 : index
    %0 = vector.load %arg1[%c0, %c0_0, %c0_1] : memref<1x64x256xf32, #tpu.memory_space<vmem>>, vector<1x64x256xf32>
    %1 = vector.shape_cast %0 : vector<1x64x256xf32> to vector<64x256xf32>
    %cst = arith.constant dense<0.000000e+00> : vector<64xf32>
    %2 = vector.multi_reduction <add>, %1, %cst [1] : vector<64x256xf32> to vector<64xf32>
    %3 = vector.shape_cast %2 : vector<64xf32> to vector<64x1xf32>
    %cst_2 = arith.constant 3.906250e-03 : f32
    %4 = vector.broadcast %cst_2 : f32 to vector<64x1xf32>
    %5 = arith.mulf %3, %4 : vector<64x1xf32>
    %c0_3 = arith.constant 0 : index
    %c0_4 = arith.constant 0 : index
    %6 = vector.load %arg2[%c0_3, %c0_4] : memref<4x64xf32, #tpu.memory_space<vmem>>, vector<4x64xf32>
    %cst_5 = arith.constant dense<0.000000e+00> : vector<4x1xf32>
    %7 = tpu.matmul %6, %5, %cst_5 {dimension_numbers = #tpu.dot_dimension_numbers<[1], [0], [0], [1], [0, 0, 1, 1], [], []>} : vector<4x64xf32>, vector<64x1xf32>, vector<4x1xf32> -> vector<4x1xf32>
    %c0_6 = arith.constant 0 : index
    %c0_7 = arith.constant 0 : index
    %8 = vector.load %arg3[%c0_6, %c0_7] : memref<4x1xf32, #tpu.memory_space<vmem>>, vector<4x1xf32>
    %9 = arith.addf %7, %8 : vector<4x1xf32>
    %cst_8 = arith.constant 0.000000e+00 : f32
    %10 = vector.broadcast %cst_8 : f32 to vector<4x1xf32>
    %11 = arith.maximumf %9, %10 : vector<4x1xf32>
    %c0_9 = arith.constant 0 : index
    %c0_10 = arith.constant 0 : index
    %12 = vector.load %arg4[%c0_9, %c0_10] : memref<64x4xf32, #tpu.memory_space<vmem>>, vector<64x4xf32>
    %cst_11 = arith.constant dense<0.000000e+00> : vector<64x1xf32>
    %13 = tpu.matmul %12, %11, %cst_11 {dimension_numbers = #tpu.dot_dimension_numbers<[1], [0], [0], [1], [0, 0, 1, 1], [], []>} : vector<64x4xf32>, vector<4x1xf32>, vector<64x1xf32> -> vector<64x1xf32>
    %c0_12 = arith.constant 0 : index
    %c0_13 = arith.constant 0 : index
    %14 = vector.load %arg5[%c0_12, %c0_13] : memref<64x1xf32, #tpu.memory_space<vmem>>, vector<64x1xf32>
    %15 = arith.addf %13, %14 : vector<64x1xf32>
    %16 = arith.negf %15 : vector<64x1xf32>
    %17 = math.exp %16 : vector<64x1xf32>
    %cst_14 = arith.constant 1.000000e+00 : f32
    %18 = vector.broadcast %cst_14 : f32 to vector<64x1xf32>
    %19 = arith.addf %18, %17 : vector<64x1xf32>
    %20 = arith.divf %18, %19 : vector<64x1xf32>
    %21 = vector.broadcast %20 : vector<64x1xf32> to vector<64x256xf32>
    %22 = arith.mulf %1, %21 : vector<64x256xf32>
    %c0_15 = arith.constant 0 : index
    %c0_16 = arith.constant 0 : index
    %c0_17 = arith.constant 0 : index
    %23 = vector.load %arg6[%c0_15, %c0_16, %c0_17] : memref<1x64x256xf32, #tpu.memory_space<vmem>>, vector<1x64x256xf32>
    %24 = vector.shape_cast %23 : vector<1x64x256xf32> to vector<64x256xf32>
    %25 = vector.shape_cast %22 : vector<64x256xf32> to vector<1x64x256xf32>
    tpu.vector_store %arg6[%c0_15, %c0_16, %c0_17], %25 {strides = array<i32>} : memref<1x64x256xf32, #tpu.memory_space<vmem>>, vector<1x64x256xf32>,
    return
  }
  func.func @transform_0(%arg0: i32) -> (i32, i32, i32) {
    %c0_i32 = arith.constant 0 : i32
    %c0_i32_0 = arith.constant 0 : i32
    %c0_i32_1 = arith.constant 0 : i32
    return %arg0, %c0_i32, %c0_i32_0 : i32, i32, i32
  }
  func.func @transform_1(%arg0: i32) -> (i32, i32) {
    %c0_i32 = arith.constant 0 : i32
    %c0_i32_0 = arith.constant 0 : i32
    %c0_i32_1 = arith.constant 0 : i32
    return %c0_i32, %c0_i32_0 : i32, i32
  }
  func.func @transform_2(%arg0: i32) -> (i32, i32) {
    %c0_i32 = arith.constant 0 : i32
    %c0_i32_0 = arith.constant 0 : i32
    %c0_i32_1 = arith.constant 0 : i32
    return %c0_i32, %c0_i32_0 : i32, i32
  }
  func.func @transform_3(%arg0: i32) -> (i32, i32) {
    %c0_i32 = arith.constant 0 : i32
    %c0_i32_0 = arith.constant 0 : i32
    %c0_i32_1 = arith.constant 0 : i32
    return %c0_i32, %c0_i32_0 : i32, i32
  }
  func.func @transform_4(%arg0: i32) -> (i32, i32) {
    %c0_i32 = arith.constant 0 : i32
    %c0_i32_0 = arith.constant 0 : i32
    %c0_i32_1 = arith.constant 0 : i32
    return %c0_i32, %c0_i32_0 : i32, i32
  }
  func.func @transform_5(%arg0: i32) -> (i32, i32, i32) {
    %c0_i32 = arith.constant 0 : i32
    %c0_i32_0 = arith.constant 0 : i32
    %c0_i32_1 = arith.constant 0 : i32
    return %arg0, %c0_i32, %c0_i32_0 : i32, i32, i32
  }
}

</mosaic_0001>

<llo_original>
// kernel: tpu_custom_call.1
$region0: #{tpu_custom_call.1}
  #allocation0 [shape = 'u32[]', space=smem, size = 0x4, offset = 0x4, fixed_abs, tag = 'smem constant byte address 0x4 - core index']
  #allocation1 [shape = 'u32[72,128]{1,0:T(1,128)}', space=vmem, size = 0x9000, scoped, tag = 'internal scratch']
  %s0 = inlined_call_operand.hbm [shape: f32[2,64,256], index: 0, kind: input, shape index: {}]
  %s1 = inlined_call_operand.vmem [shape: f32[4,64], index: 1, kind: input, shape index: {}]
  %s2 = inlined_call_operand.vmem [shape: f32[4,1], index: 2, kind: input, shape index: {}]
  %s3 = inlined_call_operand.vmem [shape: f32[64,4], index: 3, kind: input, shape index: {}]
  %s4 = inlined_call_operand.vmem [shape: f32[64,1], index: 4, kind: input, shape index: {}]
  %s5 = inlined_call_operand.hbm [shape: f32[2,64,256], index: 5, kind: output, shape index: {}]
  %s6 = sld [smem:[#allocation0]]
  $region57: #{tpu_custom_call.1} parent=0
    _
  %s8 = ssub.s32 1, %s6
  %s9 = scalar_select 0, %s8, %s6
  $region1: #{tpu_custom_call.1} parent=0
    #allocation2 [shape = 'u8[131072]{0}', space=vmem, size = 0x20000, scoped, tag = 'input window, operand 0']
    #allocation3 [shape = 's32[2]{0}', space=sflag, size = 0x8, scoped, tag = 'scoped memory for tpu_custom_call.1']
    #allocation4 [shape = 's32[2]{0}', space=sflag, size = 0x8, scoped, tag = 'scoped memory for tpu_custom_call.1']
    #allocation5 [shape = 'u8[131072]{0}', space=vmem, size = 0x20000, scoped, tag = 'output window, operand 0']
    %10 = vsyncpa [#allocation3], 0
    %s11 = scalar_lea.sflag [#allocation3], 1
    %12 = vsyncpa %s11, 0
    %13 = vsyncpa [#allocation4], 0
    %s14 = scalar_lea.sflag [#allocation4], 1
    %15 = vsyncpa %s14, 0
    loop: start=0, step=1, limit=4
    $region2: #{tpu_custom_call.1} parent=1 // loop_pre_header
      _
    $region3: #{tpu_custom_call.1} parent=1 // loop_header
      %s17 = sphi 0, %s21
      %p18 = scmp.ge.s32.totalorder %s17, 4
      %s27 = sphi 0, %s29
      %s30 = sphi 0, %s27
      %s31 = sphi 0, %s30
      %s47 = sphi 0, %s31
      %s51 = sphi 0, %s51
      %s53 = sphi 0, %s51
      %s54 = sphi 0, %s53
      %s68 = sphi 0, %s54
      %s72 = sphi 0, %s72
      %s74 = sphi 0, %s72
      %s75 = sphi 0, %s74
      %s89 = sphi 0, %s75
      %s93 = sphi 0, %s93
      %s95 = sphi 0, %s93
      %s96 = sphi 0, %s95
      %s110 = sphi 0, %s96
      %s114 = sphi 0, %s114
      %s116 = sphi 0, %s114
      %s117 = sphi 0, %s116
      %s131 = sphi 0, %s117
      %s137 = sphi 0, %s139
      %s140 = sphi 0, %s137
      %s141 = sphi 0, %s140
      %s157 = sphi 0, %s141
    $region4: #{tpu_custom_call.1} parent=1 // loop_header_branch
      %20 = sbr.rel (%p18) target = $region8
    $region5: #{tpu_custom_call.1} parent=1 // loop_body
      %s22 = ssub.s32 %s17, 1
      %s23 = ssub.s32 %s17, 2
      %s24 = sadd.s32 %s17, 1
      %s25 = ssub.s32 %s17, %s24
      %p26 = scmp.eq.s32.totalorder %s25, 0
      %s28 = sadd.s32 %s27, 1
      %s29 = scalar_select %p26, %s27, %s28
      %p32 = pneg %p26
      %p33 = scmp.eq.s32.totalorder %s17, 1
      %p34 = por %p32, %p33
      %p35 = scmp.ne.s32.totalorder %s27, %s30
      %p36 = scmp.eq.s32.totalorder %s17, 0
      %p37 = por %p35, %p36
      %p38 = scmp.ne.s32.totalorder %s27, %s30
      %p39 = scmp.eq.s32.totalorder %s22, 1
      %p40 = por %p38, %p39
      %p41 = scmp.ne.s32.totalorder %s30, %s31
      %p42 = scmp.eq.s32.totalorder %s22, 0
      %p43 = por %p41, %p42
      %p44 = scmp.ne.s32.totalorder %s30, %s31
      %p45 = scmp.eq.s32.totalorder %s23, 1
      %p46 = por %p44, %p45
      %p48 = scmp.ne.s32.totalorder %s31, %s47
      %p49 = scmp.eq.s32.totalorder %s23, 0
      %p50 = por %p48, %p49
      %s52 = sadd.s32 %s51, 1
      %p55 = scmp.eq.s32.totalorder %s17, 1
      %p56 = scmp.ne.s32.totalorder %s51, %s53
      %p57 = scmp.eq.s32.totalorder %s17, 0
      %p58 = por %p56, %p57
      %p59 = scmp.ne.s32.totalorder %s51, %s53
      %p60 = scmp.eq.s32.totalorder %s22, 1
      %p61 = por %p59, %p60
      %p62 = scmp.ne.s32.totalorder %s53, %s54
      %p63 = scmp.eq.s32.totalorder %s22, 0
      %p64 = por %p62, %p63
      %p65 = scmp.ne.s32.totalorder %s53, %s54
      %p66 = scmp.eq.s32.totalorder %s23, 1
      %p67 = por %p65, %p66
      %p69 = scmp.ne.s32.totalorder %s54, %s68
      %p70 = scmp.eq.s32.totalorder %s23, 0
      %p71 = por %p69, %p70
      %s73 = sadd.s32 %s72, 1
      %p76 = scmp.eq.s32.totalorder %s17, 1
      %p77 = scmp.ne.s32.totalorder %s72, %s74
      %p78 = scmp.eq.s32.totalorder %s17, 0
      %p79 = por %p77, %p78
      %p80 = scmp.ne.s32.totalorder %s72, %s74
      %p81 = scmp.eq.s32.totalorder %s22, 1
      %p82 = por %p80, %p81
      %p83 = scmp.ne.s32.totalorder %s74, %s75
      %p84 = scmp.eq.s32.totalorder %s22, 0
      %p85 = por %p83, %p84
      %p86 = scmp.ne.s32.totalorder %s74, %s75
      %p87 = scmp.eq.s32.totalorder %s23, 1
      %p88 = por %p86, %p87
      %p90 = scmp.ne.s32.totalorder %s75, %s89
      %p91 = scmp.eq.s32.totalorder %s23, 0
      %p92 = por %p90, %p91
      %s94 = sadd.s32 %s93, 1
      %p97 = scmp.eq.s32.totalorder %s17, 1
      %p98 = scmp.ne.s32.totalorder %s93, %s95
      %p99 = scmp.eq.s32.totalorder %s17, 0
      %p100 = por %p98, %p99
      %p101 = scmp.ne.s32.totalorder %s93, %s95
      %p102 = scmp.eq.s32.totalorder %s22, 1
      %p103 = por %p101, %p102
      %p104 = scmp.ne.s32.totalorder %s95, %s96
      %p105 = scmp.eq.s32.totalorder %s22, 0
      %p106 = por %p104, %p105
      %p107 = scmp.ne.s32.totalorder %s95, %s96
      %p108 = scmp.eq.s32.totalorder %s23, 1
      %p109 = por %p107, %p108
      %p111 = scmp.ne.s32.totalorder %s96, %s110
      %p112 = scmp.eq.s32.totalorder %s23, 0
      %p113 = por %p111, %p112
      %s115 = sadd.s32 %s114, 1
      %p118 = scmp.eq.s32.totalorder %s17, 1
      %p119 = scmp.ne.s32.totalorder %s114, %s116
      %p120 = scmp.eq.s32.totalorder %s17, 0
      %p121 = por %p119, %p120
      %p122 = scmp.ne.s32.totalorder %s114, %s116
      %p123 = scmp.eq.s32.totalorder %s22, 1
      %p124 = por %p122, %p123
      %p125 = scmp.ne.s32.totalorder %s116, %s117
      %p126 = scmp.eq.s32.totalorder %s22, 0
      %p127 = por %p125, %p126
      %p128 = scmp.ne.s32.totalorder %s116, %s117
      %p129 = scmp.eq.s32.totalorder %s23, 1
      %p130 = por %p128, %p129
      %p132 = scmp.ne.s32.totalorder %s117, %s131
      %p133 = scmp.eq.s32.totalorder %s23, 0
      %p134 = por %p132, %p133
      %s135 = ssub.s32 %s17, %s24
      %p136 = scmp.eq.s32.totalorder %s135, 0
      %s138 = sadd.s32 %s137, 1
      %s139 = scalar_select %p136, %s137, %s138
      %p142 = pneg %p136
      %p143 = scmp.eq.s32.totalorder %s17, 1
      %p144 = por %p142, %p143
      %p145 = scmp.ne.s32.totalorder %s137, %s140
      %p146 = scmp.eq.s32.totalorder %s17, 0
      %p147 = por %p145, %p146
      %p148 = scmp.ne.s32.totalorder %s137, %s140
      %p149 = scmp.eq.s32.totalorder %s22, 1
      %p150 = por %p148, %p149
      %p151 = scmp.ne.s32.totalorder %s140, %s141
      %p152 = scmp.eq.s32.totalorder %s22, 0
      %p153 = por %p151, %p152
      %p154 = scmp.ne.s32.totalorder %s140, %s141
      %p155 = scmp.eq.s32.totalorder %s23, 1
      %p156 = por %p154, %p155
      %p158 = scmp.ne.s32.totalorder %s141, %s157
      %p159 = scmp.eq.s32.totalorder %s23, 0
      %p160 = por %p158, %p159
      %p161 = scmp.le.s32.totalorder 1, %s17
      %p162 = scmp.lt.s32.totalorder %s17, 3
      %p163 = pnand %p161, %p162
      %p164 = pneg %p163
      // Predicated region
      $region9: #{tpu_custom_call.1} parent=5 // pred_check
        _
      $region10: #{tpu_custom_call.1} parent=5 // pred_check_branch
        %166 = sbr.rel (%p163) target = $region12
      $region11: #{tpu_custom_call.1} parent=5 // pred_region
        %s167 = ssub.s32 %s17, 1
        // Predicated region
        $region13: #{tpu_custom_call.1} parent=11 // pred_check
          %p168 = pneg %p64
        $region14: #{tpu_custom_call.1} parent=11 // pred_check_branch
          %170 = sbr.rel (%p168) target = $region16
        $region15: #{tpu_custom_call.1} parent=11 // pred_region
          _
        $region16: #{tpu_custom_call.1} parent=11 // pred_fallthru
          _
        // Predicated region
        $region17: #{tpu_custom_call.1} parent=11 // pred_check
          %p171 = pneg %p85
        $region18: #{tpu_custom_call.1} parent=11 // pred_check_branch
          %173 = sbr.rel (%p171) target = $region20
        $region19: #{tpu_custom_call.1} parent=11 // pred_region
          _
        $region20: #{tpu_custom_call.1} parent=11 // pred_fallthru
          _
        // Predicated region
        $region21: #{tpu_custom_call.1} parent=11 // pred_check
          %p174 = pneg %p106
        $region22: #{tpu_custom_call.1} parent=11 // pred_check_branch
          %176 = sbr.rel (%p174) target = $region24
        $region23: #{tpu_custom_call.1} parent=11 // pred_region
          _
        $region24: #{tpu_custom_call.1} parent=11 // pred_fallthru
          _
        // Predicated region
        $region25: #{tpu_custom_call.1} parent=11 // pred_check
          %p177 = pneg %p127
        $region26: #{tpu_custom_call.1} parent=11 // pred_check_branch
          %179 = sbr.rel (%p177) target = $region28
        $region27: #{tpu_custom_call.1} parent=11 // pred_region
          _
        $region28: #{tpu_custom_call.1} parent=11 // pred_fallthru
          _
      $region12: #{tpu_custom_call.1} parent=5 // pred_fallthru
        _
      %p180 = scmp.lt.s32.totalorder %s17, 2
      // Predicated region
      $region29: #{tpu_custom_call.1} parent=5 // pred_check
        %p181 = pneg %p180
      $region30: #{tpu_custom_call.1} parent=5 // pred_check_branch
        %183 = sbr.rel (%p181) target = $region32
      $region31: #{tpu_custom_call.1} parent=5 // pred_region
        // Predicated region
        $region33: #{tpu_custom_call.1} parent=31 // pred_check
          %p184 = pneg %p37
        $region34: #{tpu_custom_call.1} parent=31 // pred_check_branch
          %186 = sbr.rel (%p184) target = $region36
        $region35: #{tpu_custom_call.1} parent=31 // pred_region
          %s187 = sand.u32 %s27, 1
          %s188 = scalar_lea.sflag [#allocation3], %s187
          %s189 = sand.u32 %s27, 1
          %s190 = smul.addr %s189, 128
          %s191 = scalar_lea.vmem [#allocation2], %s190
          %193 = vsyncadd %s188, 0
          %s194 = smul.addr %s17, 16
          %s195 = smul.addr %s194, 8
          %s196 = scalar_lea.hbm %s0, %s195
          %s197 = sshll.u32 %s196, 4
          %s198 = int_to_ptr.hbm [resolvable:$true] %s197
          %s199 = sshll.u32 %s191, 4
          %s200 = int_to_ptr.vmem [resolvable:$true] %s199
          %205 = dma.hbm_to_vmem [thread:$0]  %s198, 2048, %s200, %s188, 256, 256, 16
        $region36: #{tpu_custom_call.1} parent=31 // pred_fallthru
          _
      $region32: #{tpu_custom_call.1} parent=5 // pred_fallthru
        _
      %p206 = scmp.le.s32.totalorder 1, %s17
      %p207 = scmp.lt.s32.totalorder %s17, 3
      %p208 = pnand %p206, %p207
      %p209 = pneg %p208
      // Predicated region
      $region37: #{tpu_custom_call.1} parent=5 // pred_check
        _
      $region38: #{tpu_custom_call.1} parent=5 // pred_check_branch
        %211 = sbr.rel (%p208) target = $region40
      $region39: #{tpu_custom_call.1} parent=5 // pred_region
        %s212 = ssub.s32 %s17, 1
        %s213 = sand.u32 %s30, 1
        %s214 = scalar_lea.sflag [#allocation3], %s213
        %s215 = sand.u32 %s30, 1
        %s216 = smul.addr %s215, 128
        %s217 = scalar_lea.vmem [#allocation2], %s216
        // Predicated region
        $region41: #{tpu_custom_call.1} parent=39 // pred_check
          %p218 = pneg %p43
        $region42: #{tpu_custom_call.1} parent=39 // pred_check_branch
          %220 = sbr.rel (%p218) target = $region44
        $region43: #{tpu_custom_call.1} parent=39 // pred_region
          %222 = dma.done %s214, 2048
        $region44: #{tpu_custom_call.1} parent=39 // pred_fallthru
          _
        %s223 = sand.u32 %s30, 1
        %s224 = scalar_lea.sflag [#allocation3], %s223
        %s225 = sand.u32 %s30, 1
        %s226 = smul.addr %s225, 128
        %s227 = scalar_lea.vmem [#allocation2], %s226
        %p228 = pneg %p43
        %p229 = pneg %p40
        %p230 = pneg %p64
        %p231 = pneg %p61
        %p232 = pneg %p85
        %p233 = pneg %p82
        %p234 = pneg %p106
        %p235 = pneg %p103
        %p236 = pneg %p127
        %p237 = pneg %p124
        %p238 = pneg %p153
        %p239 = pneg %p150
        %s240 = sand.u32 %s140, 1
        %s241 = scalar_lea.sflag [#allocation4], %s240
        %s242 = sand.u32 %s140, 1
        %s243 = smul.addr %s242, 128
        %s244 = scalar_lea.vmem [#allocation5], %s243
        %v245 = vld [vmem:[%s217] sm:$0xff]
        %v246 = vld [vmem:[%s217 + $0x8] sm:$0xff]
        %v247 = vld [vmem:[%s217 + $0x10] sm:$0xff]
        %v248 = vld [vmem:[%s217 + $0x18] sm:$0xff]
        %v249 = vld [vmem:[%s217 + $0x20] sm:$0xff]
        %v250 = vld [vmem:[%s217 + $0x28] sm:$0xff]
        %v251 = vld [vmem:[%s217 + $0x30] sm:$0xff]
        %v252 = vld [vmem:[%s217 + $0x38] sm:$0xff]
        %v253 = vld [vmem:[%s217 + $0x40] sm:$0xff]
        %v254 = vld [vmem:[%s217 + $0x48] sm:$0xff]
        %v255 = vld [vmem:[%s217 + $0x50] sm:$0xff]
        %v256 = vld [vmem:[%s217 + $0x58] sm:$0xff]
        %v257 = vld [vmem:[%s217 + $0x60] sm:$0xff]
        %v258 = vld [vmem:[%s217 + $0x68] sm:$0xff]
        %v259 = vld [vmem:[%s217 + $0x70] sm:$0xff]
        %v260 = vld [vmem:[%s217 + $0x78] sm:$0xff]
        %v261 = vadd.f32 %v245, %v246
        %262 = vadd.xlane.f32.xlu0 %v261
        %v263 = vpop.xlane.xlu0 %262
        %v264 = vadd.f32 %v247, %v248
        %265 = vadd.xlane.f32.xlu0 %v264
        %v266 = vpop.xlane.xlu0 %265
        %v267 = vadd.f32 %v249, %v250
        %268 = vadd.xlane.f32.xlu0 %v267
        %v269 = vpop.xlane.xlu0 %268
        %v270 = vadd.f32 %v251, %v252
        %271 = vadd.xlane.f32.xlu0 %v270
        %v272 = vpop.xlane.xlu0 %271
        %v273 = vadd.f32 %v253, %v254
        %274 = vadd.xlane.f32.xlu0 %v273
        %v275 = vpop.xlane.xlu0 %274
        %v276 = vadd.f32 %v255, %v256
        %277 = vadd.xlane.f32.xlu0 %v276
        %v278 = vpop.xlane.xlu0 %277
        %v279 = vadd.f32 %v257, %v258
        %280 = vadd.xlane.f32.xlu0 %v279
        %v281 = vpop.xlane.xlu0 %280
        %v282 = vadd.f32 %v259, %v260
        %283 = vadd.xlane.f32.xlu0 %v282
        %v284 = vpop.xlane.xlu0 %283
        %v285 = vmul.f32 %v263, 0.00390625
        %v286 = vmul.f32 %v266, 0.00390625
        %v287 = vmul.f32 %v269, 0.00390625
        %v288 = vmul.f32 %v272, 0.00390625
        %v289 = vmul.f32 %v275, 0.00390625
        %v290 = vmul.f32 %v278, 0.00390625
        %v291 = vmul.f32 %v281, 0.00390625
        %v292 = vmul.f32 %v284, 0.00390625
        %v293 = vld [vmem:[%s1] sm:$0xf]
        %v294 = vld [vmem:[%s2] sm:$0xf]
        %vm295 = vcmask 523264
        %v297 = vsel %vm295, %v293, 0
        %299 = vmatpush.msra.mxu0 0.0
        %300 = vmatpush.msra.mxu0 0.0
        %301 = vmatpush.msra.mxu0 0.0
        %302 = vmatpush.msra.mxu0 0.0
        %303 = vmatpush.msra.mxu0 0.0
        %304 = vmatpush.msra.mxu0 0.0
        %305 = vmatpush.msra.mxu0 0.0
        %306 = vmatpush.msra.mxu0 0.0
        %307 = vmatpush.msra.mxu0 %v292
        %308 = vmatpush.msra.mxu0 %v291
        %309 = vmatpush.msra.mxu0 %v290
        %310 = vmatpush.msra.mxu0 %v289
        %311 = vmatpush.msra.mxu0 %v288
        %312 = vmatpush.msra.mxu0 %v287
        %313 = vmatpush.msra.mxu0 %v286
        %314 = vmatpush.msra.mxu0 %v285
        %315 = vmatmul.f32.gmra.mxu0 %v297
        %v316 = vpop.f32.mrf.mxu0
        %v317 = vadd.f32 %v294, %v316
        %318 = vdwg.mxu0
        %v319 = vmax.f32 %v317, 0.0
        %v320 = vld [vmem:[%s3] sm:$0xff]
        %v321 = vld [vmem:[%s3 + $0x8] sm:$0xff]
        %v322 = vld [vmem:[%s3 + $0x10] sm:$0xff]
        %v323 = vld [vmem:[%s3 + $0x18] sm:$0xff]
        %v324 = vld [vmem:[%s3 + $0x20] sm:$0xff]
        %v325 = vld [vmem:[%s3 + $0x28] sm:$0xff]
        %v326 = vld [vmem:[%s3 + $0x30] sm:$0xff]
        %v327 = vld [vmem:[%s3 + $0x38] sm:$0xff]
        %v328 = vld [vmem:[%s4] sm:$0xff]
        %v329 = vld [vmem:[%s4 + $0x8] sm:$0xff]
        %v330 = vld [vmem:[%s4 + $0x10] sm:$0xff]
        %v331 = vld [vmem:[%s4 + $0x18] sm:$0xff]
        %v332 = vld [vmem:[%s4 + $0x20] sm:$0xff]
        %v333 = vld [vmem:[%s4 + $0x28] sm:$0xff]
        %v334 = vld [vmem:[%s4 + $0x30] sm:$0xff]
        %v335 = vld [vmem:[%s4 + $0x38] sm:$0xff]
        %vm336 = vcmask 31744
        %v338 = vsel %vm336, %v320, 0
        %v341 = vsel %vm336, %v321, 0
        %v344 = vsel %vm336, %v322, 0
        %v347 = vsel %vm336, %v323, 0
        %v350 = vsel %vm336, %v324, 0
        %v353 = vsel %vm336, %v325, 0
        %v356 = vsel %vm336, %v326, 0
        %v359 = vsel %vm336, %v327, 0
        %vm361 = vcmask 1043456
        %v363 = vsel %vm361, %v319, 0
        %365 = vmatpush.msra.mxu0 0.0
        %366 = vmatpush.msra.mxu0 0.0
        %367 = vmatpush.msra.mxu0 0.0
        %368 = vmatpush.msra.mxu0 0.0
        %369 = vmatpush.msra.mxu0 0.0
        %370 = vmatpush.msra.mxu0 0.0
        %371 = vmatpush.msra.mxu0 0.0
        %372 = vmatpush.msra.mxu0 0.0
        %373 = vmatpush.msra.mxu0 0.0
        %374 = vmatpush.msra.mxu0 0.0
        %375 = vmatpush.msra.mxu0 0.0
        %376 = vmatpush.msra.mxu0 0.0
        %377 = vmatpush.msra.mxu0 0.0
        %378 = vmatpush.msra.mxu0 0.0
        %379 = vmatpush.msra.mxu0 0.0
        %380 = vmatpush.msra.mxu0 %v363
        %381 = vmatmul.f32.gmra.mxu0 %v338
        %v382 = vpop.f32.mrf.mxu0
        %v383 = vadd.f32 %v328, %v382
        %384 = vmatmul.f32.gmra.mxu0 %v341
        %v385 = vpop.f32.mrf.mxu0
        %v386 = vadd.f32 %v329, %v385
        %387 = vmatmul.f32.gmra.mxu0 %v344
        %v388 = vpop.f32.mrf.mxu0
        %v389 = vadd.f32 %v330, %v388
        %390 = vmatmul.f32.gmra.mxu0 %v347
        %v391 = vpop.f32.mrf.mxu0
        %v392 = vadd.f32 %v331, %v391
        %393 = vmatmul.f32.gmra.mxu0 %v350
        %v394 = vpop.f32.mrf.mxu0
        %v395 = vadd.f32 %v332, %v394
        %396 = vmatmul.f32.gmra.mxu0 %v353
        %v397 = vpop.f32.mrf.mxu0
        %v398 = vadd.f32 %v333, %v397
        %399 = vmatmul.f32.gmra.mxu0 %v356
        %v400 = vpop.f32.mrf.mxu0
        %v401 = vadd.f32 %v334, %v400
        %402 = vmatmul.f32.gmra.mxu0 %v359
        %v403 = vpop.f32.mrf.mxu0
        %v404 = vadd.f32 %v335, %v403
        %405 = vdwg.mxu0
        %v406 = vxor.u32 %v383, 2147483648
        %v407 = vxor.u32 %v386, 2147483648
        %v408 = vxor.u32 %v389, 2147483648
        %v409 = vxor.u32 %v392, 2147483648
        %v410 = vxor.u32 %v395, 2147483648
        %v411 = vxor.u32 %v398, 2147483648
        %v412 = vxor.u32 %v401, 2147483648
        %v413 = vxor.u32 %v404, 2147483648
        %v414 = vmul.f32 %v406, 1.442695
        %v415 = vpow.pop %v414
        %v416 = vmul.f32 %v407, 1.442695
        %v417 = vpow.pop %v416
        %v418 = vmul.f32 %v408, 1.442695
        %v419 = vpow.pop %v418
        %v420 = vmul.f32 %v409, 1.442695
        %v421 = vpow.pop %v420
        %v422 = vmul.f32 %v410, 1.442695
        %v423 = vpow.pop %v422
        %v424 = vmul.f32 %v411, 1.442695
        %v425 = vpow.pop %v424
        %v426 = vmul.f32 %v412, 1.442695
        %v427 = vpow.pop %v426
        %v428 = vmul.f32 %v413, 1.442695
        %v429 = vpow.pop %v428
        %v430 = vadd.f32 %v415, 1.0
        %v431 = vadd.f32 %v417, 1.0
        %v432 = vadd.f32 %v419, 1.0
        %v433 = vadd.f32 %v421, 1.0
        %v434 = vadd.f32 %v423, 1.0
        %v435 = vadd.f32 %v425, 1.0
        %v436 = vadd.f32 %v427, 1.0
        %v437 = vadd.f32 %v429, 1.0
        %v438 = vrcp.pop %v430
        %v439 = vmul.f32 %v430, %v438
        %v440 = vsub.f32 1.0, %v439
        %v441 = vmul.f32 %v438, %v440
        %v442 = vadd.f32 %v438, %v441
        %vm443 = vweird.f32 %v430
        %vm444 = vweird.f32 %v438
        %vm445 = vmor %vm443, %vm444
        %v446 = vsel %vm445, %v438, %v442
        %v447 = vand.u32 2147483647, %v430
        %vm448 = vcmp.eq.f32.partialorder %v447, 8.507059e+37
        %v449 = vand.u32 %v430, 2147483648
        %v450 = vor.u32 1.1754944e-38, %v449
        %v451 = vsel %vm448, %v450, %v446
        %v452 = vmul.f32 1.0, %v451
        %v453 = vrcp.pop %v431
        %v454 = vmul.f32 %v431, %v453
        %v455 = vsub.f32 1.0, %v454
        %v456 = vmul.f32 %v453, %v455
        %v457 = vadd.f32 %v453, %v456
        %vm458 = vweird.f32 %v431
        %vm459 = vweird.f32 %v453
        %vm460 = vmor %vm458, %vm459
        %v461 = vsel %vm460, %v453, %v457
        %v462 = vand.u32 2147483647, %v431
        %vm463 = vcmp.eq.f32.partialorder %v462, 8.507059e+37
        %v464 = vand.u32 %v431, 2147483648
        %v465 = vor.u32 1.1754944e-38, %v464
        %v466 = vsel %vm463, %v465, %v461
        %v467 = vmul.f32 1.0, %v466
        %v468 = vrcp.pop %v432
        %v469 = vmul.f32 %v432, %v468
        %v470 = vsub.f32 1.0, %v469
        %v471 = vmul.f32 %v468, %v470
        %v472 = vadd.f32 %v468, %v471
        %vm473 = vweird.f32 %v432
        %vm474 = vweird.f32 %v468
        %vm475 = vmor %vm473, %vm474
        %v476 = vsel %vm475, %v468, %v472
        %v477 = vand.u32 2147483647, %v432
        %vm478 = vcmp.eq.f32.partialorder %v477, 8.507059e+37
        %v479 = vand.u32 %v432, 2147483648
        %v480 = vor.u32 1.1754944e-38, %v479
        %v481 = vsel %vm478, %v480, %v476
        %v482 = vmul.f32 1.0, %v481
        %v483 = vrcp.pop %v433
        %v484 = vmul.f32 %v433, %v483
        %v485 = vsub.f32 1.0, %v484
        %v486 = vmul.f32 %v483, %v485
        %v487 = vadd.f32 %v483, %v486
        %vm488 = vweird.f32 %v433
        %vm489 = vweird.f32 %v483
        %vm490 = vmor %vm488, %vm489
        %v491 = vsel %vm490, %v483, %v487
        %v492 = vand.u32 2147483647, %v433
        %vm493 = vcmp.eq.f32.partialorder %v492, 8.507059e+37
        %v494 = vand.u32 %v433, 2147483648
        %v495 = vor.u32 1.1754944e-38, %v494
        %v496 = vsel %vm493, %v495, %v491
        %v497 = vmul.f32 1.0, %v496
        %v498 = vrcp.pop %v434
        %v499 = vmul.f32 %v434, %v498
        %v500 = vsub.f32 1.0, %v499
        %v501 = vmul.f32 %v498, %v500
        %v502 = vadd.f32 %v498, %v501
        %vm503 = vweird.f32 %v434
        %vm504 = vweird.f32 %v498
        %vm505 = vmor %vm503, %vm504
        %v506 = vsel %vm505, %v498, %v502
        %v507 = vand.u32 2147483647, %v434
        %vm508 = vcmp.eq.f32.partialorder %v507, 8.507059e+37
        %v509 = vand.u32 %v434, 2147483648
        %v510 = vor.u32 1.1754944e-38, %v509
        %v511 = vsel %vm508, %v510, %v506
        %v512 = vmul.f32 1.0, %v511
        %v513 = vrcp.pop %v435
        %v514 = vmul.f32 %v435, %v513
        %v515 = vsub.f32 1.0, %v514
        %v516 = vmul.f32 %v513, %v515
        %v517 = vadd.f32 %v513, %v516
        %vm518 = vweird.f32 %v435
        %vm519 = vweird.f32 %v513
        %vm520 = vmor %vm518, %vm519
        %v521 = vsel %vm520, %v513, %v517
        %v522 = vand.u32 2147483647, %v435
        %vm523 = vcmp.eq.f32.partialorder %v522, 8.507059e+37
        %v524 = vand.u32 %v435, 2147483648
        %v525 = vor.u32 1.1754944e-38, %v524
        %v526 = vsel %vm523, %v525, %v521
        %v527 = vmul.f32 1.0, %v526
        %v528 = vrcp.pop %v436
        %v529 = vmul.f32 %v436, %v528
        %v530 = vsub.f32 1.0, %v529
        %v531 = vmul.f32 %v528, %v530
        %v532 = vadd.f32 %v528, %v531
        %vm533 = vweird.f32 %v436
        %vm534 = vweird.f32 %v528
        %vm535 = vmor %vm533, %vm534
        %v536 = vsel %vm535, %v528, %v532
        %v537 = vand.u32 2147483647, %v436
        %vm538 = vcmp.eq.f32.partialorder %v537, 8.507059e+37
        %v539 = vand.u32 %v436, 2147483648
        %v540 = vor.u32 1.1754944e-38, %v539
        %v541 = vsel %vm538, %v540, %v536
        %v542 = vmul.f32 1.0, %v541
        %v543 = vrcp.pop %v437
        %v544 = vmul.f32 %v437, %v543
        %v545 = vsub.f32 1.0, %v544
        %v546 = vmul.f32 %v543, %v545
        %v547 = vadd.f32 %v543, %v546
        %vm548 = vweird.f32 %v437
        %vm549 = vweird.f32 %v543
        %vm550 = vmor %vm548, %vm549
        %v551 = vsel %vm550, %v543, %v547
        %v552 = vand.u32 2147483647, %v437
        %vm553 = vcmp.eq.f32.partialorder %v552, 8.507059e+37
        %v554 = vand.u32 %v437, 2147483648
        %v555 = vor.u32 1.1754944e-38, %v554
        %v556 = vsel %vm553, %v555, %v551
        %v557 = vmul.f32 1.0, %v556
        %559 = vset.pattern.permute.xlu0 0
        %560 = vperm.xlu0 %559, %v452
        %v561 = vpop.permute.xlu0 %560
        %564 = vset.pattern.permute.xlu0 0
        %565 = vperm.xlu0 %564, %v467
        %v566 = vpop.permute.xlu0 %565
        %569 = vset.pattern.permute.xlu0 0
        %570 = vperm.xlu0 %569, %v482
        %v571 = vpop.permute.xlu0 %570
        %574 = vset.pattern.permute.xlu0 0
        %575 = vperm.xlu0 %574, %v497
        %v576 = vpop.permute.xlu0 %575
        %579 = vset.pattern.permute.xlu0 0
        %580 = vperm.xlu0 %579, %v512
        %v581 = vpop.permute.xlu0 %580
        %584 = vset.pattern.permute.xlu0 0
        %585 = vperm.xlu0 %584, %v527
        %v586 = vpop.permute.xlu0 %585
        %589 = vset.pattern.permute.xlu0 0
        %590 = vperm.xlu0 %589, %v542
        %v591 = vpop.permute.xlu0 %590
        %594 = vset.pattern.permute.xlu0 0
        %595 = vperm.xlu0 %594, %v557
        %v596 = vpop.permute.xlu0 %595
        %v598 = vmul.f32 %v245, %v561
        %v599 = vmul.f32 %v246, %v561
        %v600 = vmul.f32 %v247, %v566
        %v601 = vmul.f32 %v248, %v566
        %v602 = vmul.f32 %v249, %v571
        %v603 = vmul.f32 %v250, %v571
        %v604 = vmul.f32 %v251, %v576
        %v605 = vmul.f32 %v252, %v576
        %v606 = vmul.f32 %v253, %v581
        %v607 = vmul.f32 %v254, %v581
        %v608 = vmul.f32 %v255, %v586
        %v609 = vmul.f32 %v256, %v586
        %v610 = vmul.f32 %v257, %v591
        %v611 = vmul.f32 %v258, %v591
        %v612 = vmul.f32 %v259, %v596
        %v613 = vmul.f32 %v260, %v596
        %614 = vst [vmem:[%s244] sm:$0xff] %v598
        %615 = vst [vmem:[%s244 + $0x8] sm:$0xff] %v599
        %616 = vst [vmem:[%s244 + $0x10] sm:$0xff] %v600
        %617 = vst [vmem:[%s244 + $0x18] sm:$0xff] %v601
        %618 = vst [vmem:[%s244 + $0x20] sm:$0xff] %v602
        %619 = vst [vmem:[%s244 + $0x28] sm:$0xff] %v603
        %620 = vst [vmem:[%s244 + $0x30] sm:$0xff] %v604
        %621 = vst [vmem:[%s244 + $0x38] sm:$0xff] %v605
        %622 = vst [vmem:[%s244 + $0x40] sm:$0xff] %v606
        %623 = vst [vmem:[%s244 + $0x48] sm:$0xff] %v607
        %624 = vst [vmem:[%s244 + $0x50] sm:$0xff] %v608
        %625 = vst [vmem:[%s244 + $0x58] sm:$0xff] %v609
        %626 = vst [vmem:[%s244 + $0x60] sm:$0xff] %v610
        %627 = vst [vmem:[%s244 + $0x68] sm:$0xff] %v611
        %628 = vst [vmem:[%s244 + $0x70] sm:$0xff] %v612
        %629 = vst [vmem:[%s244 + $0x78] sm:$0xff] %v613
        %s630 = sand.u32 %s140, 1
        %s631 = scalar_lea.sflag [#allocation4], %s630
        %s632 = sand.u32 %s140, 1
        %s633 = smul.addr %s632, 128
        %s634 = scalar_lea.vmem [#allocation5], %s633
        // Predicated region
        $region45: #{tpu_custom_call.1} parent=39 // pred_check
          %p635 = pneg %p150
        $region46: #{tpu_custom_call.1} parent=39 // pred_check_branch
          %637 = sbr.rel (%p635) target = $region48
        $region47: #{tpu_custom_call.1} parent=39 // pred_region
          %639 = vsyncadd %s631, 0
          %s640 = smul.addr %s22, 16
          %s641 = smul.addr %s640, 8
          %s642 = scalar_lea.hbm %s5, %s641
          %s643 = sshll.u32 %s634, 4
          %s644 = int_to_ptr.vmem [resolvable:$true] %s643
          %s645 = sshll.u32 %s642, 4
          %s646 = int_to_ptr.hbm [resolvable:$true] %s645
          %651 = dma.vmem_to_hbm [thread:$0]  %s644, 2048, %s646, %s631, 256, 256, 16
        $region48: #{tpu_custom_call.1} parent=39 // pred_fallthru
          _
      $region40: #{tpu_custom_call.1} parent=5 // pred_fallthru
        _
      %p652 = scmp.le.s32.totalorder 2, %s17
      // Predicated region
      $region49: #{tpu_custom_call.1} parent=5 // pred_check
        %p653 = pneg %p652
      $region50: #{tpu_custom_call.1} parent=5 // pred_check_branch
        %655 = sbr.rel (%p653) target = $region52
      $region51: #{tpu_custom_call.1} parent=5 // pred_region
        %s656 = ssub.s32 %s17, 2
        // Predicated region
        $region53: #{tpu_custom_call.1} parent=51 // pred_check
          %p657 = pneg %p156
        $region54: #{tpu_custom_call.1} parent=51 // pred_check_branch
          %659 = sbr.rel (%p657) target = $region56
        $region55: #{tpu_custom_call.1} parent=51 // pred_region
          %s660 = sand.u32 %s141, 1
          %s661 = scalar_lea.sflag [#allocation4], %s660
          %s662 = sand.u32 %s141, 1
          %s663 = smul.addr %s662, 128
          %s664 = scalar_lea.vmem [#allocation5], %s663
          %666 = dma.done %s661, 2048
        $region56: #{tpu_custom_call.1} parent=51 // pred_fallthru
          _
      $region52: #{tpu_custom_call.1} parent=5 // pred_fallthru
        _
    $region6: #{tpu_custom_call.1} parent=1 // loop_footer
      %s21 = sadd.s32 1, %s17
    $region7: #{tpu_custom_call.1} parent=1 // loop_footer_branch
      %16 = sbr.rel target = $region3
    $region8: #{tpu_custom_call.1} parent=1 // loop_exit
      _
    %667 = vsyncpa [#allocation3], 1
    %s668 = scalar_lea.sflag [#allocation3], 1
    %669 = vsyncpa %s668, 1
    %670 = vsyncpa [#allocation4], 1
    %s671 = scalar_lea.sflag [#allocation4], 1
    %672 = vsyncpa %s671, 1

</llo_original>
